<compile_context>
chip_gen: v7x
topology: tpu7x:2x2x1
jax: 0.10.0
libtpu: 0.0.40
codegen_flags: <defaults>
</compile_context>

<pallas_src>
from math import exp

import numpy as np
import jax
import jax.numpy as jnp
from jax.experimental import pallas as pl
from jax.experimental.pallas import tpu as pltpu


WINDOW_SIZE = 11
SIGMA = 1.5
PAD = WINDOW_SIZE // 2
C1 = (0.01 * 1.0) ** 2
C2 = (0.03 * 1.0) ** 2

_MAX_PLANES_PER_BLOCK = 8      # bounds the static repack unroll (5*Bp copies)


def _gaussian_1d(window_size=WINDOW_SIZE, sigma=SIGMA):
    """Matches gaussian(): normalized 1-D Gaussian."""
    g = np.array(
        [exp(-((x - window_size // 2) ** 2) / float(2 * sigma ** 2))
         for x in range(window_size)],
        dtype=np.float64,
    )
    return (g / g.sum()).astype(np.float32)


def _band_matrix(n, g1d):
    """(n, n) banded Toeplitz M with M[i, j] = g1d[j - i + PAD].

    M @ x is the 1-D zero-padded 'same' correlation of x's rows with g1d,
    exactly matching F.conv2d(padding=window_size//2) along that axis.
    """
    ws = len(g1d)
    m = np.zeros((n, n), dtype=np.float32)
    for i in range(n):
        for k in range(ws):
            j = i + k - (ws // 2)
            if 0 <= j < n:
                m[i, j] = g1d[k]
    return m


def _vmem_capacity_bytes():
    """Physical VMEM of the local TPU generation (fallback: v7x-sized)."""
    try:
        info = pltpu.get_tpu_info()
        cap = getattr(info, "vmem_capacity_bytes", None)
        if cap:
            return int(cap)
    except Exception:
        pass
    return 64 * 1024 * 1024


def _make_ssim_kernel(H, W, Bp):
    """Kernel closed over static plane size and planes-per-block."""
    PW = Bp * W

    def kernel(x1_ref, x2_ref, bh_ref, bw_ref, out_ref, pack_ref):
        bh = bh_ref[...]                     # (H, H) row-direction blur matrix
        bw = bw_ref[...]                     # (W, W) col-direction blur matrix

        x1 = x1_ref[0]                       # (Bp*H, W) planes row-stacked
        x2 = x2_ref[0]

        # 5 per-pixel products for the whole block (computed once, VPU),
        # row-stacked -> ONE MXU matmul for the W-direction blur of all
        # 5*Bp planes.
        slab = jnp.concatenate([x1, x2, x1 * x1, x2 * x2, x1 * x2], axis=0)
        right = jnp.dot(slab, bw, preferred_element_type=jnp.float32)

        # Repack the 5*Bp right-blurred planes along lanes so the H-direction
        # blur is also ONE matmul: (H, H) @ (H, 5*Bp*W).  Static-slice copies
        # through a VMEM scratch (cheap vs. the blur matmuls).
        for k in range(5):
            for n in range(Bp):
                r = (k * Bp + n) * H
                c = (k * Bp + n) * W
                pack_ref[:, c:c + W] = right[r:r + H, :]
        blurred = jnp.dot(bh, pack_ref[...],
                          preferred_element_type=jnp.float32)   # (H, 5*Bp*W)

        mu1 = blurred[:, 0 * PW:1 * PW]      # each (H, Bp*W); plane n at
        mu2 = blurred[:, 1 * PW:2 * PW]      # columns [n*W, (n+1)*W)
        e11 = blurred[:, 2 * PW:3 * PW]
        e22 = blurred[:, 3 * PW:4 * PW]
        e12 = blurred[:, 4 * PW:5 * PW]

        mu1_sq = mu1 * mu1
        mu2_sq = mu2 * mu2
        mu1_mu2 = mu1 * mu2
        sigma1_sq = e11 - mu1_sq
        sigma2_sq = e22 - mu2_sq
        sigma12 = e12 - mu1_mu2

        num = (2.0 * mu1_mu2 + C1) * (2.0 * sigma12 + C2)
        den = (mu1_sq + mu2_sq + C1) * (sigma1_sq + sigma2_sq + C2)
        inv = pl.reciprocal(den, approx=True)     # EUP slot (co-issues)
        inv = inv * (2.0 - den * inv)             # one NR step -> ~f32 exact
        ssim_map = num * inv                      # (H, Bp*W)

        # Single lane-dense (1, Bp*W) store: rows reduced, per-plane W
        # segments kept so padded planes can be dropped in the epilogue.
        out_ref[0] = jnp.sum(ssim_map, axis=0, keepdims=True)

    return kernel


def ssim_loss(img1, img2):
    """1 - SSIM(img1, img2); inputs NCHW float, returns scalar f32."""
    assert img1.shape == img2.shape
    N, C, H, W = img1.shape
    NC = N * C

    x1 = img1.reshape(NC, H, W).astype(jnp.float32)
    x2 = img2.reshape(NC, H, W).astype(jnp.float32)

    # ---- block sizing, derived per TPU generation -----------------------
    vmem_cap = _vmem_capacity_bytes()
    vmem_limit = int(min(vmem_cap, max(32 * 1024 * 1024, int(0.75 * vmem_cap))))
    plane_bytes = 4 * H * W
    # ~24x plane-block bytes live in VMEM (double-buffered inputs + slab /
    # right / pack / blurred / ssim temporaries); keep inside half the limit.
    bp_budget = max(1, (vmem_limit // 2) // (24 * plane_bytes))
    Bp = int(min(NC, _MAX_PLANES_PER_BLOCK, bp_budget))
    # Keep G = ceil(NC/Bp) >= 2 (both v7x TensorCores busy) and ideally >= 4
    # (pipelining) whenever there are enough planes to split.
    if NC >= 4:
        Bp = max(1, min(Bp, NC // 4))
    elif NC >= 2:
        Bp = max(1, min(Bp, NC // 2))

    G = -(-NC // Bp)
    NC_pad = G * Bp
    if NC_pad != NC:
        pad = ((0, NC_pad - NC), (0, 0), (0, 0))
        x1 = jnp.pad(x1, pad)
        x2 = jnp.pad(x2, pad)
    # Free reshape: planes of a block row-stacked along the sublane axis.
    x1 = x1.reshape(G, Bp * H, W)
    x2 = x2.reshape(G, Bp * H, W)

    g1d = _gaussian_1d()
    bh = jnp.asarray(_band_matrix(H, g1d))      # used as  bh @ plane
    bw = jnp.asarray(_band_matrix(W, g1d).T)    # used as  plane @ bw

    kernel = _make_ssim_kernel(H, W, Bp)
    PW = Bp * W

    per_block = pl.pallas_call(
        kernel,
        out_shape=jax.ShapeDtypeStruct((G, 1, PW), jnp.float32),
        grid_spec=pltpu.PrefetchScalarGridSpec(
            num_scalar_prefetch=0,
            grid=(G,),
            in_specs=[
                pl.BlockSpec((1, Bp * H, W), lambda i: (i, 0, 0)),
                pl.BlockSpec((1, Bp * H, W), lambda i: (i, 0, 0)),
                pl.BlockSpec((H, H), lambda i: (0, 0)),
                pl.BlockSpec((W, W), lambda i: (0, 0)),
            ],
            out_specs=pl.BlockSpec((1, 1, PW), lambda i: (i, 0, 0)),
            scratch_shapes=[pltpu.VMEM((H, 5 * PW), jnp.float32)],
        ),
        compiler_params=pltpu.CompilerParams(
            dimension_semantics=("parallel",),
            vmem_limit_bytes=vmem_limit,
        ),
    )(x1, x2, bh, bw)

    # Drop zero-padded planes, then the tiny final reduction in plain JAX.
    plane_partials = per_block.reshape(NC_pad, W)[:NC]
    ssim_mean = jnp.sum(plane_partials) / jnp.float32(NC * H * W)
    return jnp.float32(1.0) - ssim_mean


if __name__ == "__main__":
    key = jax.random.PRNGKey(0)
    k1, k2 = jax.random.split(key)
    N, C, H, W = 2, 4, 16, 16
    img1 = jax.random.uniform(k1, (N, C, H, W), dtype=jnp.float32)
    img2 = jax.random.uniform(k2, (N, C, H, W), dtype=jnp.float32)

    loss = jax.jit(ssim_loss)(img1, img2)
    jax.block_until_ready(loss)
    print("KERNEL_OK")
</pallas_src>

<mosaic_0001>
module attributes {stable_mosaic.version = 11 : i64} {
  func.func @kernel(%arg0: i32, %arg1: memref<1x32x16xf32, #tpu.memory_space<vmem>>, %arg2: memref<1x32x16xf32, #tpu.memory_space<vmem>>, %arg3: memref<16x16xf32, #tpu.memory_space<vmem>>, %arg4: memref<16x16xf32, #tpu.memory_space<vmem>>, %arg5: memref<1x1x32xf32, #tpu.memory_space<vmem>>, %arg6: memref<16x160xf32, #tpu.memory_space<vmem>>) attributes {dimension_semantics = [#tpu.dimension_semantics<parallel>], iteration_bounds = array<i64: 4>, scalar_prefetch = 0 : i64, scratch_operands = 1 : i64, tpu.core_type = #tpu.core_type<tc>, window_params = [{transform_indices = @transform_0, window_bounds = array<i64: 1, 32, 16>}, {transform_indices = @transform_1, window_bounds = array<i64: 1, 32, 16>}, {pipeline_mode = #tpu.pipeline_mode<synchronous>, transform_indices = @transform_2, window_bounds = array<i64: 16, 16>}, {pipeline_mode = #tpu.pipeline_mode<synchronous>, transform_indices = @transform_3, window_bounds = array<i64: 16, 16>}, {transform_indices = @transform_4, window_bounds = array<i64: 1, 1, 32>}]} {
    %c0 = arith.constant 0 : index
    %c0_0 = arith.constant 0 : index
    %0 = vector.load %arg3[%c0, %c0_0] : memref<16x16xf32, #tpu.memory_space<vmem>>, vector<16x16xf32>
    %c0_1 = arith.constant 0 : index
    %c0_2 = arith.constant 0 : index
    %1 = vector.load %arg4[%c0_1, %c0_2] : memref<16x16xf32, #tpu.memory_space<vmem>>, vector<16x16xf32>
    %c0_3 = arith.constant 0 : index
    %c0_4 = arith.constant 0 : index
    %c0_5 = arith.constant 0 : index
    %2 = vector.load %arg1[%c0_3, %c0_4, %c0_5] : memref<1x32x16xf32, #tpu.memory_space<vmem>>, vector<1x32x16xf32>
    %3 = vector.shape_cast %2 : vector<1x32x16xf32> to vector<32x16xf32>
    %c0_6 = arith.constant 0 : index
    %c0_7 = arith.constant 0 : index
    %c0_8 = arith.constant 0 : index
    %4 = vector.load %arg2[%c0_6, %c0_7, %c0_8] : memref<1x32x16xf32, #tpu.memory_space<vmem>>, vector<1x32x16xf32>
    %5 = vector.shape_cast %4 : vector<1x32x16xf32> to vector<32x16xf32>
    %6 = arith.mulf %3, %3 : vector<32x16xf32>
    %7 = arith.mulf %5, %5 : vector<32x16xf32>
    %8 = arith.mulf %3, %5 : vector<32x16xf32>
    %9 = tpu.concatenate %3, %5, %6, %7, %8 in 0 : vector<32x16xf32>, vector<32x16xf32>, vector<32x16xf32>, vector<32x16xf32>, vector<32x16xf32> -> vector<160x16xf32>
    %cst = arith.constant dense<0.000000e+00> : vector<160x16xf32>
    %10 = tpu.matmul %9, %1, %cst {dimension_numbers = #tpu.dot_dimension_numbers<[1], [0], [0], [1], [0, 0, 1, 1], [], []>} : vector<160x16xf32>, vector<16x16xf32>, vector<160x16xf32> -> vector<160x16xf32>
    %11 = vector.extract_strided_slice %10 {offsets = [0, 0], sizes = [16, 16], strides = [1, 1]} : vector<160x16xf32> to vector<16x16xf32>
    %c0_9 = arith.constant 0 : index
    %c0_10 = arith.constant 0 : index
    %12 = vector.load %arg6[%c0_9, %c0_10] : memref<16x160xf32, #tpu.memory_space<vmem>>, vector<16x16xf32>
    tpu.vector_store %arg6[%c0_9, %c0_10], %11 {strides = array<i32>} : memref<16x160xf32, #tpu.memory_space<vmem>>, vector<16x16xf32>,
    %13 = vector.extract_strided_slice %10 {offsets = [16, 0], sizes = [16, 16], strides = [1, 1]} : vector<160x16xf32> to vector<16x16xf32>
    %c0_11 = arith.constant 0 : index
    %c16 = arith.constant 16 : index
    %14 = vector.load %arg6[%c0_11, %c16] : memref<16x160xf32, #tpu.memory_space<vmem>>, vector<16x16xf32>
    tpu.vector_store %arg6[%c0_11, %c16], %13 {strides = array<i32>} : memref<16x160xf32, #tpu.memory_space<vmem>>, vector<16x16xf32>,
    %15 = vector.extract_strided_slice %10 {offsets = [32, 0], sizes = [16, 16], strides = [1, 1]} : vector<160x16xf32> to vector<16x16xf32>
    %c0_12 = arith.constant 0 : index
    %c32 = arith.constant 32 : index
    %16 = vector.load %arg6[%c0_12, %c32] : memref<16x160xf32, #tpu.memory_space<vmem>>, vector<16x16xf32>
    tpu.vector_store %arg6[%c0_12, %c32], %15 {strides = array<i32>} : memref<16x160xf32, #tpu.memory_space<vmem>>, vector<16x16xf32>,
    %17 = vector.extract_strided_slice %10 {offsets = [48, 0], sizes = [16, 16], strides = [1, 1]} : vector<160x16xf32> to vector<16x16xf32>
    %c0_13 = arith.constant 0 : index
    %c48 = arith.constant 48 : index
    %18 = vector.load %arg6[%c0_13, %c48] : memref<16x160xf32, #tpu.memory_space<vmem>>, vector<16x16xf32>
    tpu.vector_store %arg6[%c0_13, %c48], %17 {strides = array<i32>} : memref<16x160xf32, #tpu.memory_space<vmem>>, vector<16x16xf32>,
    %19 = vector.extract_strided_slice %10 {offsets = [64, 0], sizes = [16, 16], strides = [1, 1]} : vector<160x16xf32> to vector<16x16xf32>
    %c0_14 = arith.constant 0 : index
    %c64 = arith.constant 64 : index
    %20 = vector.load %arg6[%c0_14, %c64] : memref<16x160xf32, #tpu.memory_space<vmem>>, vector<16x16xf32>
    tpu.vector_store %arg6[%c0_14, %c64], %19 {strides = array<i32>} : memref<16x160xf32, #tpu.memory_space<vmem>>, vector<16x16xf32>,
    %21 = vector.extract_strided_slice %10 {offsets = [80, 0], sizes = [16, 16], strides = [1, 1]} : vector<160x16xf32> to vector<16x16xf32>
    %c0_15 = arith.constant 0 : index
    %c80 = arith.constant 80 : index
    %22 = vector.load %arg6[%c0_15, %c80] : memref<16x160xf32, #tpu.memory_space<vmem>>, vector<16x16xf32>
    tpu.vector_store %arg6[%c0_15, %c80], %21 {strides = array<i32>} : memref<16x160xf32, #tpu.memory_space<vmem>>, vector<16x16xf32>,
    %23 = vector.extract_strided_slice %10 {offsets = [96, 0], sizes = [16, 16], strides = [1, 1]} : vector<160x16xf32> to vector<16x16xf32>
    %c0_16 = arith.constant 0 : index
    %c96 = arith.constant 96 : index
    %24 = vector.load %arg6[%c0_16, %c96] : memref<16x160xf32, #tpu.memory_space<vmem>>, vector<16x16xf32>
    tpu.vector_store %arg6[%c0_16, %c96], %23 {strides = array<i32>} : memref<16x160xf32, #tpu.memory_space<vmem>>, vector<16x16xf32>,
    %25 = vector.extract_strided_slice %10 {offsets = [112, 0], sizes = [16, 16], strides = [1, 1]} : vector<160x16xf32> to vector<16x16xf32>
    %c0_17 = arith.constant 0 : index
    %c112 = arith.constant 112 : index
    %26 = vector.load %arg6[%c0_17, %c112] : memref<16x160xf32, #tpu.memory_space<vmem>>, vector<16x16xf32>
    tpu.vector_store %arg6[%c0_17, %c112], %25 {strides = array<i32>} : memref<16x160xf32, #tpu.memory_space<vmem>>, vector<16x16xf32>,
    %27 = vector.extract_strided_slice %10 {offsets = [128, 0], sizes = [16, 16], strides = [1, 1]} : vector<160x16xf32> to vector<16x16xf32>
    %c0_18 = arith.constant 0 : index
    %c128 = arith.constant 128 : index
    %28 = vector.load %arg6[%c0_18, %c128] : memref<16x160xf32, #tpu.memory_space<vmem>>, vector<16x16xf32>
    tpu.vector_store %arg6[%c0_18, %c128], %27 {strides = array<i32>} : memref<16x160xf32, #tpu.memory_space<vmem>>, vector<16x16xf32>,
    %29 = vector.extract_strided_slice %10 {offsets = [144, 0], sizes = [16, 16], strides = [1, 1]} : vector<160x16xf32> to vector<16x16xf32>
    %c0_19 = arith.constant 0 : index
    %c144 = arith.constant 144 : index
    %30 = vector.load %arg6[%c0_19, %c144] : memref<16x160xf32, #tpu.memory_space<vmem>>, vector<16x16xf32>
    tpu.vector_store %arg6[%c0_19, %c144], %29 {strides = array<i32>} : memref<16x160xf32, #tpu.memory_space<vmem>>, vector<16x16xf32>,
    %c0_20 = arith.constant 0 : index
    %c0_21 = arith.constant 0 : index
    %31 = vector.load %arg6[%c0_20, %c0_21] : memref<16x160xf32, #tpu.memory_space<vmem>>, vector<16x160xf32>
    %cst_22 = arith.constant dense<0.000000e+00> : vector<16x160xf32>
    %32 = tpu.matmul %0, %31, %cst_22 {dimension_numbers = #tpu.dot_dimension_numbers<[1], [0], [0], [1], [0, 0, 1, 1], [], []>} : vector<16x16xf32>, vector<16x160xf32>, vector<16x160xf32> -> vector<16x160xf32>
    %33 = vector.extract_strided_slice %32 {offsets = [0, 0], sizes = [16, 32], strides = [1, 1]} : vector<16x160xf32> to vector<16x32xf32>
    %34 = vector.extract_strided_slice %32 {offsets = [0, 32], sizes = [16, 32], strides = [1, 1]} : vector<16x160xf32> to vector<16x32xf32>
    %35 = vector.extract_strided_slice %32 {offsets = [0, 64], sizes = [16, 32], strides = [1, 1]} : vector<16x160xf32> to vector<16x32xf32>
    %36 = vector.extract_strided_slice %32 {offsets = [0, 96], sizes = [16, 32], strides = [1, 1]} : vector<16x160xf32> to vector<16x32xf32>
    %37 = vector.extract_strided_slice %32 {offsets = [0, 128], sizes = [16, 32], strides = [1, 1]} : vector<16x160xf32> to vector<16x32xf32>
    %38 = arith.mulf %33, %33 : vector<16x32xf32>
    %39 = arith.mulf %34, %34 : vector<16x32xf32>
    %40 = arith.mulf %33, %34 : vector<16x32xf32>
    %41 = arith.subf %35, %38 : vector<16x32xf32>
    %42 = arith.subf %36, %39 : vector<16x32xf32>
    %43 = arith.subf %37, %40 : vector<16x32xf32>
    %cst_23 = arith.constant 2.000000e+00 : f32
    %44 = vector.broadcast %cst_23 : f32 to vector<16x32xf32>
    %45 = arith.mulf %44, %40 : vector<16x32xf32>
    %cst_24 = arith.constant 9.99999974E-5 : f32
    %46 = vector.broadcast %cst_24 : f32 to vector<16x32xf32>
    %47 = arith.addf %45, %46 : vector<16x32xf32>
    %cst_25 = arith.constant 2.000000e+00 : f32
    %48 = vector.broadcast %cst_25 : f32 to vector<16x32xf32>
    %49 = arith.mulf %48, %43 : vector<16x32xf32>
    %cst_26 = arith.constant 8.99999984E-4 : f32
    %50 = vector.broadcast %cst_26 : f32 to vector<16x32xf32>
    %51 = arith.addf %49, %50 : vector<16x32xf32>
    %52 = arith.mulf %47, %51 : vector<16x32xf32>
    %53 = arith.addf %38, %39 : vector<16x32xf32>
    %cst_27 = arith.constant 9.99999974E-5 : f32
    %54 = vector.broadcast %cst_27 : f32 to vector<16x32xf32>
    %55 = arith.addf %53, %54 : vector<16x32xf32>
    %56 = arith.addf %41, %42 : vector<16x32xf32>
    %cst_28 = arith.constant 8.99999984E-4 : f32
    %57 = vector.broadcast %cst_28 : f32 to vector<16x32xf32>
    %58 = arith.addf %56, %57 : vector<16x32xf32>
    %59 = arith.mulf %55, %58 : vector<16x32xf32>
    %60 = tpu.reciprocal %59 {approx = true} : vector<16x32xf32> -> vector<16x32xf32>
    %61 = arith.mulf %59, %60 : vector<16x32xf32>
    %cst_29 = arith.constant 2.000000e+00 : f32
    %62 = vector.broadcast %cst_29 : f32 to vector<16x32xf32>
    %63 = arith.subf %62, %61 : vector<16x32xf32>
    %64 = arith.mulf %60, %63 : vector<16x32xf32>
    %65 = arith.mulf %52, %64 : vector<16x32xf32>
    %cst_30 = arith.constant dense<0.000000e+00> : vector<32xf32>
    %66 = vector.multi_reduction <add>, %65, %cst_30 [0] : vector<16x32xf32> to vector<32xf32>
    %67 = vector.shape_cast %66 : vector<32xf32> to vector<1x32xf32>
    %c0_31 = arith.constant 0 : index
    %c0_32 = arith.constant 0 : index
    %c0_33 = arith.constant 0 : index
    %68 = vector.load %arg5[%c0_31, %c0_32, %c0_33] : memref<1x1x32xf32, #tpu.memory_space<vmem>>, vector<1x1x32xf32>
    %69 = vector.shape_cast %68 : vector<1x1x32xf32> to vector<1x32xf32>
    %70 = vector.shape_cast %67 : vector<1x32xf32> to vector<1x1x32xf32>
    tpu.vector_store %arg5[%c0_31, %c0_32, %c0_33], %70 {strides = array<i32>} : memref<1x1x32xf32, #tpu.memory_space<vmem>>, vector<1x1x32xf32>,
    return
  }
  func.func @transform_0(%arg0: i32) -> (i32, i32, i32) {
    %c0_i32 = arith.constant 0 : i32
    %c0_i32_0 = arith.constant 0 : i32
    %c0_i32_1 = arith.constant 0 : i32
    return %arg0, %c0_i32, %c0_i32_0 : i32, i32, i32
  }
  func.func @transform_1(%arg0: i32) -> (i32, i32, i32) {
    %c0_i32 = arith.constant 0 : i32
    %c0_i32_0 = arith.constant 0 : i32
    %c0_i32_1 = arith.constant 0 : i32
    return %arg0, %c0_i32, %c0_i32_0 : i32, i32, i32
  }
  func.func @transform_2(%arg0: i32) -> (i32, i32) {
    %c0_i32 = arith.constant 0 : i32
    %c0_i32_0 = arith.constant 0 : i32
    %c0_i32_1 = arith.constant 0 : i32
    return %c0_i32, %c0_i32_0 : i32, i32
  }
  func.func @transform_3(%arg0: i32) -> (i32, i32) {
    %c0_i32 = arith.constant 0 : i32
    %c0_i32_0 = arith.constant 0 : i32
    %c0_i32_1 = arith.constant 0 : i32
    return %c0_i32, %c0_i32_0 : i32, i32
  }
  func.func @transform_4(%arg0: i32) -> (i32, i32, i32) {
    %c0_i32 = arith.constant 0 : i32
    %c0_i32_0 = arith.constant 0 : i32
    %c0_i32_1 = arith.constant 0 : i32
    return %arg0, %c0_i32, %c0_i32_0 : i32, i32, i32
  }
}

</mosaic_0001>

<llo_original>
// kernel: ssim_loss.1
$region0: #{ssim_loss.1}
  #allocation0 [shape = 'u32[]', space=smem, size = 0x4, offset = 0x4, fixed_abs, tag = 'smem constant byte address 0x4 - core index']
  #allocation1 [shape = 'u32[144,128]{1,0:T(1,128)}', space=vmem, size = 0x12000, scoped, tag = 'internal scratch']
  #allocation2 [shape = 'f32[16,160]{1,0:T(8,128)}', space=vmem, size = 0x4000, scoped, tag = 'scratch operand']
  %s0 = inlined_call_operand.hbm [shape: f32[4,32,16], index: 0, kind: input, shape index: {}]
  %s1 = inlined_call_operand.hbm [shape: f32[4,32,16], index: 1, kind: input, shape index: {}]
  %s2 = inlined_call_operand.vmem [shape: f32[16,16], index: 2, kind: input, shape index: {}, may-alias: {2,3}]
  %s3 = inlined_call_operand.vmem [shape: f32[16,16], index: 3, kind: input, shape index: {}, may-alias: {2,3}]
  %s4 = inlined_call_operand.vmem [shape: f32[4,1,32], index: 4, kind: output, shape index: {}]
  %s5 = sld [smem:[#allocation0]]
  $region57: #{ssim_loss.1} parent=0
    _
  %s7 = ssub.s32 1, %s5
  %s8 = scalar_select 0, %s7, %s5
  $region1: #{ssim_loss.1} parent=0
    #allocation3 [shape = 'u8[32768]{0}', space=vmem, size = 0x8000, scoped, tag = 'input window, operand 0']
    #allocation4 [shape = 's32[2]{0}', space=sflag, size = 0x8, scoped, tag = 'scoped memory for ssim_loss.1']
    #allocation5 [shape = 'u8[32768]{0}', space=vmem, size = 0x8000, scoped, tag = 'input window, operand 1']
    #allocation6 [shape = 's32[2]{0}', space=sflag, size = 0x8, scoped, tag = 'scoped memory for ssim_loss.1']
    %9 = vsyncpa [#allocation4], 0
    %s10 = scalar_lea.sflag [#allocation4], 1
    %11 = vsyncpa %s10, 0
    %12 = vsyncpa [#allocation6], 0
    %s13 = scalar_lea.sflag [#allocation6], 1
    %14 = vsyncpa %s13, 0
    loop: start=0, step=1, limit=6
    $region2: #{ssim_loss.1} parent=1 // loop_pre_header
      _
    $region3: #{ssim_loss.1} parent=1 // loop_header
      %s16 = sphi 0, %s20
      %p17 = scmp.ge.s32.totalorder %s16, 6
      %s26 = sphi 0, %s28
      %s29 = sphi 0, %s26
      %s30 = sphi 0, %s29
      %s46 = sphi 0, %s30
      %s52 = sphi 0, %s54
      %s55 = sphi 0, %s52
      %s56 = sphi 0, %s55
      %s72 = sphi 0, %s56
      %s76 = sphi 0, %s76
      %s78 = sphi 0, %s76
      %s79 = sphi 0, %s78
      %s93 = sphi 0, %s79
      %s97 = sphi 0, %s97
      %s99 = sphi 0, %s97
      %s100 = sphi 0, %s99
      %s114 = sphi 0, %s100
      %s120 = sphi 0, %s122
      %s123 = sphi 0, %s120
      %s124 = sphi 0, %s123
      %s140 = sphi 0, %s124
    $region4: #{ssim_loss.1} parent=1 // loop_header_branch
      %19 = sbr.rel (%p17) target = $region8
    $region5: #{ssim_loss.1} parent=1 // loop_body
      %s21 = ssub.s32 %s16, 1
      %s22 = ssub.s32 %s16, 2
      %s23 = sadd.s32 %s16, 1
      %s24 = ssub.s32 %s16, %s23
      %p25 = scmp.eq.s32.totalorder %s24, 0
      %s27 = sadd.s32 %s26, 1
      %s28 = scalar_select %p25, %s26, %s27
      %p31 = pneg %p25
      %p32 = scmp.eq.s32.totalorder %s16, 3
      %p33 = por %p31, %p32
      %p34 = scmp.ne.s32.totalorder %s26, %s29
      %p35 = scmp.eq.s32.totalorder %s16, 0
      %p36 = por %p34, %p35
      %p37 = scmp.ne.s32.totalorder %s26, %s29
      %p38 = scmp.eq.s32.totalorder %s21, 3
      %p39 = por %p37, %p38
      %p40 = scmp.ne.s32.totalorder %s29, %s30
      %p41 = scmp.eq.s32.totalorder %s21, 0
      %p42 = por %p40, %p41
      %p43 = scmp.ne.s32.totalorder %s29, %s30
      %p44 = scmp.eq.s32.totalorder %s22, 3
      %p45 = por %p43, %p44
      %p47 = scmp.ne.s32.totalorder %s30, %s46
      %p48 = scmp.eq.s32.totalorder %s22, 0
      %p49 = por %p47, %p48
      %s50 = ssub.s32 %s16, %s23
      %p51 = scmp.eq.s32.totalorder %s50, 0
      %s53 = sadd.s32 %s52, 1
      %s54 = scalar_select %p51, %s52, %s53
      %p57 = pneg %p51
      %p58 = scmp.eq.s32.totalorder %s16, 3
      %p59 = por %p57, %p58
      %p60 = scmp.ne.s32.totalorder %s52, %s55
      %p61 = scmp.eq.s32.totalorder %s16, 0
      %p62 = por %p60, %p61
      %p63 = scmp.ne.s32.totalorder %s52, %s55
      %p64 = scmp.eq.s32.totalorder %s21, 3
      %p65 = por %p63, %p64
      %p66 = scmp.ne.s32.totalorder %s55, %s56
      %p67 = scmp.eq.s32.totalorder %s21, 0
      %p68 = por %p66, %p67
      %p69 = scmp.ne.s32.totalorder %s55, %s56
      %p70 = scmp.eq.s32.totalorder %s22, 3
      %p71 = por %p69, %p70
      %p73 = scmp.ne.s32.totalorder %s56, %s72
      %p74 = scmp.eq.s32.totalorder %s22, 0
      %p75 = por %p73, %p74
      %s77 = sadd.s32 %s76, 1
      %p80 = scmp.eq.s32.totalorder %s16, 3
      %p81 = scmp.ne.s32.totalorder %s76, %s78
      %p82 = scmp.eq.s32.totalorder %s16, 0
      %p83 = por %p81, %p82
      %p84 = scmp.ne.s32.totalorder %s76, %s78
      %p85 = scmp.eq.s32.totalorder %s21, 3
      %p86 = por %p84, %p85
      %p87 = scmp.ne.s32.totalorder %s78, %s79
      %p88 = scmp.eq.s32.totalorder %s21, 0
      %p89 = por %p87, %p88
      %p90 = scmp.ne.s32.totalorder %s78, %s79
      %p91 = scmp.eq.s32.totalorder %s22, 3
      %p92 = por %p90, %p91
      %p94 = scmp.ne.s32.totalorder %s79, %s93
      %p95 = scmp.eq.s32.totalorder %s22, 0
      %p96 = por %p94, %p95
      %s98 = sadd.s32 %s97, 1
      %p101 = scmp.eq.s32.totalorder %s16, 3
      %p102 = scmp.ne.s32.totalorder %s97, %s99
      %p103 = scmp.eq.s32.totalorder %s16, 0
      %p104 = por %p102, %p103
      %p105 = scmp.ne.s32.totalorder %s97, %s99
      %p106 = scmp.eq.s32.totalorder %s21, 3
      %p107 = por %p105, %p106
      %p108 = scmp.ne.s32.totalorder %s99, %s100
      %p109 = scmp.eq.s32.totalorder %s21, 0
      %p110 = por %p108, %p109
      %p111 = scmp.ne.s32.totalorder %s99, %s100
      %p112 = scmp.eq.s32.totalorder %s22, 3
      %p113 = por %p111, %p112
      %p115 = scmp.ne.s32.totalorder %s100, %s114
      %p116 = scmp.eq.s32.totalorder %s22, 0
      %p117 = por %p115, %p116
      %s118 = ssub.s32 %s16, %s23
      %p119 = scmp.eq.s32.totalorder %s118, 0
      %s121 = sadd.s32 %s120, 1
      %s122 = scalar_select %p119, %s120, %s121
      %p125 = pneg %p119
      %p126 = scmp.eq.s32.totalorder %s16, 3
      %p127 = por %p125, %p126
      %p128 = scmp.ne.s32.totalorder %s120, %s123
      %p129 = scmp.eq.s32.totalorder %s16, 0
      %p130 = por %p128, %p129
      %p131 = scmp.ne.s32.totalorder %s120, %s123
      %p132 = scmp.eq.s32.totalorder %s21, 3
      %p133 = por %p131, %p132
      %p134 = scmp.ne.s32.totalorder %s123, %s124
      %p135 = scmp.eq.s32.totalorder %s21, 0
      %p136 = por %p134, %p135
      %p137 = scmp.ne.s32.totalorder %s123, %s124
      %p138 = scmp.eq.s32.totalorder %s22, 3
      %p139 = por %p137, %p138
      %p141 = scmp.ne.s32.totalorder %s124, %s140
      %p142 = scmp.eq.s32.totalorder %s22, 0
      %p143 = por %p141, %p142
      %p144 = scmp.le.s32.totalorder 1, %s16
      %p145 = scmp.lt.s32.totalorder %s16, 5
      %p146 = pnand %p144, %p145
      %p147 = pneg %p146
      // Predicated region
      $region9: #{ssim_loss.1} parent=5 // pred_check
        _
      $region10: #{ssim_loss.1} parent=5 // pred_check_branch
        %149 = sbr.rel (%p146) target = $region12
      $region11: #{ssim_loss.1} parent=5 // pred_region
        %s150 = ssub.s32 %s16, 1
        // Predicated region
        $region13: #{ssim_loss.1} parent=11 // pred_check
          %p151 = pneg %p89
        $region14: #{ssim_loss.1} parent=11 // pred_check_branch
          %153 = sbr.rel (%p151) target = $region16
        $region15: #{ssim_loss.1} parent=11 // pred_region
          _
        $region16: #{ssim_loss.1} parent=11 // pred_fallthru
          _
        // Predicated region
        $region17: #{ssim_loss.1} parent=11 // pred_check
          %p154 = pneg %p110
        $region18: #{ssim_loss.1} parent=11 // pred_check_branch
          %156 = sbr.rel (%p154) target = $region20
        $region19: #{ssim_loss.1} parent=11 // pred_region
          _
        $region20: #{ssim_loss.1} parent=11 // pred_fallthru
          _
      $region12: #{ssim_loss.1} parent=5 // pred_fallthru
        _
      %p157 = scmp.lt.s32.totalorder %s16, 4
      // Predicated region
      $region21: #{ssim_loss.1} parent=5 // pred_check
        %p158 = pneg %p157
      $region22: #{ssim_loss.1} parent=5 // pred_check_branch
        %160 = sbr.rel (%p158) target = $region24
      $region23: #{ssim_loss.1} parent=5 // pred_region
        // Predicated region
        $region25: #{ssim_loss.1} parent=23 // pred_check
          %p161 = pneg %p36
        $region26: #{ssim_loss.1} parent=23 // pred_check_branch
          %163 = sbr.rel (%p161) target = $region28
        $region27: #{ssim_loss.1} parent=23 // pred_region
          %s164 = sand.u32 %s26, 1
          %s165 = scalar_lea.sflag [#allocation4], %s164
          %s166 = sand.u32 %s26, 1
          %s167 = smul.addr %s166, 32
          %s168 = scalar_lea.vmem [#allocation3], %s167
          %s170 = ssub.s32 512, 512
          %171 = vsyncadd %s165, %s170
          %s172 = smul.addr %s16, 4
          %s173 = smul.addr %s172, 128
          %s174 = scalar_lea.hbm %s0, %s173
          %s175 = sshll.u32 %s168, 4
          %s176 = int_to_ptr.vmem [resolvable:$true] %s175
          %181 = dma.hbm_to_vmem [thread:$0]  %s174, 512, %s176, %s165, 128, 128, 8
        $region28: #{ssim_loss.1} parent=23 // pred_fallthru
          _
        // Predicated region
        $region29: #{ssim_loss.1} parent=23 // pred_check
          %p182 = pneg %p62
        $region30: #{ssim_loss.1} parent=23 // pred_check_branch
          %184 = sbr.rel (%p182) target = $region32
        $region31: #{ssim_loss.1} parent=23 // pred_region
          %s185 = sand.u32 %s52, 1
          %s186 = scalar_lea.sflag [#allocation6], %s185
          %s187 = sand.u32 %s52, 1
          %s188 = smul.addr %s187, 32
          %s189 = scalar_lea.vmem [#allocation5], %s188
          %s191 = ssub.s32 512, 512
          %192 = vsyncadd %s186, %s191
          %s193 = smul.addr %s16, 4
          %s194 = smul.addr %s193, 128
          %s195 = scalar_lea.hbm %s1, %s194
          %s196 = sshll.u32 %s189, 4
          %s197 = int_to_ptr.vmem [resolvable:$true] %s196
          %202 = dma.hbm_to_vmem [thread:$0]  %s195, 512, %s197, %s186, 128, 128, 8
        $region32: #{ssim_loss.1} parent=23 // pred_fallthru
          _
      $region24: #{ssim_loss.1} parent=5 // pred_fallthru
        _
      %p203 = scmp.le.s32.totalorder 1, %s16
      %p204 = scmp.lt.s32.totalorder %s16, 5
      %p205 = pnand %p203, %p204
      %p206 = pneg %p205
      // Predicated region
      $region33: #{ssim_loss.1} parent=5 // pred_check
        _
      $region34: #{ssim_loss.1} parent=5 // pred_check_branch
        %208 = sbr.rel (%p205) target = $region36
      $region35: #{ssim_loss.1} parent=5 // pred_region
        %s209 = ssub.s32 %s16, 1
        %s210 = sand.u32 %s29, 1
        %s211 = scalar_lea.sflag [#allocation4], %s210
        %s212 = sand.u32 %s29, 1
        %s213 = smul.addr %s212, 32
        %s214 = scalar_lea.vmem [#allocation3], %s213
        // Predicated region
        $region37: #{ssim_loss.1} parent=35 // pred_check
          %p215 = pneg %p42
        $region38: #{ssim_loss.1} parent=35 // pred_check_branch
          %217 = sbr.rel (%p215) target = $region40
        $region39: #{ssim_loss.1} parent=35 // pred_region
          %218 = dma.done %s211, 512
        $region40: #{ssim_loss.1} parent=35 // pred_fallthru
          _
        %s219 = sand.u32 %s55, 1
        %s220 = scalar_lea.sflag [#allocation6], %s219
        %s221 = sand.u32 %s55, 1
        %s222 = smul.addr %s221, 32
        %s223 = scalar_lea.vmem [#allocation5], %s222
        // Predicated region
        $region41: #{ssim_loss.1} parent=35 // pred_check
          %p224 = pneg %p68
        $region42: #{ssim_loss.1} parent=35 // pred_check_branch
          %226 = sbr.rel (%p224) target = $region44
        $region43: #{ssim_loss.1} parent=35 // pred_region
          %227 = dma.done %s220, 512
        $region44: #{ssim_loss.1} parent=35 // pred_fallthru
          _
        %s228 = sand.u32 %s29, 1
        %s229 = scalar_lea.sflag [#allocation4], %s228
        %s230 = sand.u32 %s29, 1
        %s231 = smul.addr %s230, 32
        %s232 = scalar_lea.vmem [#allocation3], %s231
        %p233 = pneg %p42
        %p234 = pneg %p39
        %s235 = sand.u32 %s55, 1
        %s236 = scalar_lea.sflag [#allocation6], %s235
        %s237 = sand.u32 %s55, 1
        %s238 = smul.addr %s237, 32
        %s239 = scalar_lea.vmem [#allocation5], %s238
        %p240 = pneg %p68
        %p241 = pneg %p65
        %p242 = pneg %p89
        %p243 = pneg %p86
        %p244 = pneg %p110
        %p245 = pneg %p107
        %p246 = pneg %p136
        %p247 = pneg %p133
        %p248 = scmp.lt.s32.totalorder %s21, 3
        %s249 = scalar_select %p248, %s21, 3
        %s250 = scalar_lea.vmem %s4, %s249
        %p251 = scmp.lt.s32.totalorder %s21, 3
        %s252 = scalar_select %p251, %s21, 3
        %s253 = scalar_lea.vmem %s4, %s252
        %v254 = vld [vmem:[%s2] sm:$0xff]
        %v255 = vld [vmem:[%s2 + $0x8] sm:$0xff]
        %v256 = vld [vmem:[%s3] sm:$0xff]
        %v257 = vld [vmem:[%s3 + $0x8] sm:$0xff]
        %v258 = vld [vmem:[%s214] sm:$0xff]
        %v259 = vld [vmem:[%s214 + $0x8] sm:$0xff]
        %v260 = vld [vmem:[%s214 + $0x10] sm:$0xff]
        %v261 = vld [vmem:[%s214 + $0x18] sm:$0xff]
        %v262 = vld [vmem:[%s223] sm:$0xff]
        %v263 = vld [vmem:[%s223 + $0x8] sm:$0xff]
        %v264 = vld [vmem:[%s223 + $0x10] sm:$0xff]
        %v265 = vld [vmem:[%s223 + $0x18] sm:$0xff]
        %v266 = vmul.f32 %v258, %v258
        %v267 = vmul.f32 %v259, %v259
        %v268 = vmul.f32 %v260, %v260
        %v269 = vmul.f32 %v261, %v261
        %v270 = vmul.f32 %v262, %v262
        %v271 = vmul.f32 %v263, %v263
        %v272 = vmul.f32 %v264, %v264
        %v273 = vmul.f32 %v265, %v265
        %v274 = vmul.f32 %v258, %v262
        %v275 = vmul.f32 %v259, %v263
        %v276 = vmul.f32 %v260, %v264
        %v277 = vmul.f32 %v261, %v265
        %vm278 = vcmask 130048
        %v280 = vsel %vm278, %v258, 0
        %v283 = vsel %vm278, %v259, 0
        %v286 = vsel %vm278, %v260, 0
        %v289 = vsel %vm278, %v261, 0
        %v292 = vsel %vm278, %v262, 0
        %v295 = vsel %vm278, %v263, 0
        %v298 = vsel %vm278, %v264, 0
        %v301 = vsel %vm278, %v265, 0
        %v304 = vsel %vm278, %v266, 0
        %v307 = vsel %vm278, %v267, 0
        %v310 = vsel %vm278, %v268, 0
        %v313 = vsel %vm278, %v269, 0
        %v316 = vsel %vm278, %v270, 0
        %v319 = vsel %vm278, %v271, 0
        %v322 = vsel %vm278, %v272, 0
        %v325 = vsel %vm278, %v273, 0
        %v328 = vsel %vm278, %v274, 0
        %v331 = vsel %vm278, %v275, 0
        %v334 = vsel %vm278, %v276, 0
        %v337 = vsel %vm278, %v277, 0
        %339 = vmatprep.subr.mxu0 0.0
        %340 = vmatpush1.msra.mxu0 %v256
        %341 = vmatprep.subr.mxu0 0.0
        %342 = vmatpush1.msra.mxu0 %v257
        %343 = vmatprep.subr.mxu0 0.0
        %344 = vmatpush1.msra.mxu0 0.0
        %345 = vmatprep.subr.mxu0 0.0
        %346 = vmatpush1.msra.mxu0 0.0
        %347 = vmatprep.subr.mxu0 0.0
        %348 = vmatpush1.msra.mxu0 0.0
        %349 = vmatprep.subr.mxu0 0.0
        %350 = vmatpush1.msra.mxu0 0.0
        %351 = vmatprep.subr.mxu0 0.0
        %352 = vmatpush1.msra.mxu0 0.0
        %353 = vmatprep.subr.mxu0 0.0
        %354 = vmatpush1.msra.mxu0 0.0
        %355 = vmatprep.subr.mxu0 0.0
        %356 = vmatpush1.msra.mxu0 0.0
        %357 = vmatprep.subr.mxu0 0.0
        %358 = vmatpush1.msra.mxu0 0.0
        %359 = vmatprep.subr.mxu0 0.0
        %360 = vmatpush1.msra.mxu0 0.0
        %361 = vmatprep.subr.mxu0 0.0
        %362 = vmatpush1.msra.mxu0 0.0
        %363 = vmatprep.subr.mxu0 0.0
        %364 = vmatpush1.msra.mxu0 0.0
        %365 = vmatprep.subr.mxu0 0.0
        %366 = vmatpush1.msra.mxu0 0.0
        %367 = vmatprep.subr.mxu0 0.0
        %368 = vmatpush1.msra.mxu0 0.0
        %369 = vmatprep.subr.mxu0 0.0
        %370 = vmatpush1.msra.mxu0 0.0
        %371 = vmatprep.subr.mxu0 0.0
        %372 = vmatpush1.msra.mxu0 0.0
        %373 = vmatprep.subr.mxu0 0.0
        %374 = vmatpush1.msra.mxu0 0.0
        %375 = vmatprep.subr.mxu0 0.0
        %376 = vmatpush1.msra.mxu0 0.0
        %377 = vmatprep.subr.mxu0 0.0
        %378 = vmatpush1.msra.mxu0 0.0
        %379 = vmatprep.subr.mxu0 0.0
        %380 = vmatpush1.msra.mxu0 0.0
        %381 = vmatprep.subr.mxu0 0.0
        %382 = vmatpush1.msra.mxu0 0.0
        %383 = vmatprep.subr.mxu0 0.0
        %384 = vmatpush1.msra.mxu0 0.0
        %385 = vmatprep.subr.mxu0 0.0
        %386 = vmatpush1.msra.mxu0 0.0
        %387 = vmatprep.subr.mxu0 0.0
        %388 = vmatpush1.msra.mxu0 0.0
        %389 = vmatprep.subr.mxu0 0.0
        %390 = vmatpush1.msra.mxu0 0.0
        %391 = vmatprep.subr.mxu0 0.0
        %392 = vmatpush1.msra.mxu0 0.0
        %393 = vmatprep.subr.mxu0 0.0
        %394 = vmatpush1.msra.mxu0 0.0
        %395 = vmatprep.subr.mxu0 0.0
        %396 = vmatpush1.msra.mxu0 0.0
        %397 = vmatprep.subr.mxu0 0.0
        %398 = vmatpush1.msra.mxu0 0.0
        %399 = vmatprep.subr.mxu0 0.0
        %400 = vmatpush1.msra.mxu0 0.0
        %401 = vmatprep.subr.mxu0 0.0
        %402 = vmatpush1.msra.mxu0 0.0
        %403 = vmatprep.mubr.f32.mxu0 0.0
        %404 = vmatmul.mubr.f32.gmra.mrb[0].mxu0 %v280
        %v405 = vpop.f32.mrb[0].mxu0
        %v406 = vadd.f32 0.0, %v405
        %v407 = vpop.f32.mrb[0].mxu0
        %408 = vmatprep.mubr.f32.mxu0 0.0
        %409 = vmatmul.mubr.f32.gmra.mrb[0].mxu0 %v283
        %v410 = vpop.f32.mrb[0].mxu0
        %v411 = vadd.f32 0.0, %v410
        %v412 = vpop.f32.mrb[0].mxu0
        %413 = vmatprep.mubr.f32.mxu0 0.0
        %414 = vmatmul.mubr.f32.gmra.mrb[0].mxu0 %v286
        %v415 = vpop.f32.mrb[0].mxu0
        %v416 = vadd.f32 0.0, %v415
        %v417 = vpop.f32.mrb[0].mxu0
        %418 = vmatprep.mubr.f32.mxu0 0.0
        %419 = vmatmul.mubr.f32.gmra.mrb[0].mxu0 %v289
        %v420 = vpop.f32.mrb[0].mxu0
        %v421 = vadd.f32 0.0, %v420
        %v422 = vpop.f32.mrb[0].mxu0
        %423 = vmatprep.mubr.f32.mxu0 0.0
        %424 = vmatmul.mubr.f32.gmra.mrb[0].mxu0 %v292
        %v425 = vpop.f32.mrb[0].mxu0
        %v426 = vadd.f32 0.0, %v425
        %v427 = vpop.f32.mrb[0].mxu0
        %428 = vmatprep.mubr.f32.mxu0 0.0
        %429 = vmatmul.mubr.f32.gmra.mrb[0].mxu0 %v295
        %v430 = vpop.f32.mrb[0].mxu0
        %v431 = vadd.f32 0.0, %v430
        %v432 = vpop.f32.mrb[0].mxu0
        %433 = vmatprep.mubr.f32.mxu0 0.0
        %434 = vmatmul.mubr.f32.gmra.mrb[0].mxu0 %v298
        %v435 = vpop.f32.mrb[0].mxu0
        %v436 = vadd.f32 0.0, %v435
        %v437 = vpop.f32.mrb[0].mxu0
        %438 = vmatprep.mubr.f32.mxu0 0.0
        %439 = vmatmul.mubr.f32.gmra.mrb[0].mxu0 %v301
        %v440 = vpop.f32.mrb[0].mxu0
        %v441 = vadd.f32 0.0, %v440
        %v442 = vpop.f32.mrb[0].mxu0
        %443 = vmatprep.mubr.f32.mxu0 0.0
        %444 = vmatmul.mubr.f32.gmra.mrb[0].mxu0 %v304
        %v445 = vpop.f32.mrb[0].mxu0
        %v446 = vadd.f32 0.0, %v445
        %v447 = vpop.f32.mrb[0].mxu0
        %448 = vmatprep.mubr.f32.mxu0 0.0
        %449 = vmatmul.mubr.f32.gmra.mrb[0].mxu0 %v307
        %v450 = vpop.f32.mrb[0].mxu0
        %v451 = vadd.f32 0.0, %v450
        %v452 = vpop.f32.mrb[0].mxu0
        %453 = vmatprep.mubr.f32.mxu0 0.0
        %454 = vmatmul.mubr.f32.gmra.mrb[0].mxu0 %v310
        %v455 = vpop.f32.mrb[0].mxu0
        %v456 = vadd.f32 0.0, %v455
        %v457 = vpop.f32.mrb[0].mxu0
        %458 = vmatprep.mubr.f32.mxu0 0.0
        %459 = vmatmul.mubr.f32.gmra.mrb[0].mxu0 %v313
        %v460 = vpop.f32.mrb[0].mxu0
        %v461 = vadd.f32 0.0, %v460
        %v462 = vpop.f32.mrb[0].mxu0
        %463 = vmatprep.mubr.f32.mxu0 0.0
        %464 = vmatmul.mubr.f32.gmra.mrb[0].mxu0 %v316
        %v465 = vpop.f32.mrb[0].mxu0
        %v466 = vadd.f32 0.0, %v465
        %v467 = vpop.f32.mrb[0].mxu0
        %468 = vmatprep.mubr.f32.mxu0 0.0
        %469 = vmatmul.mubr.f32.gmra.mrb[0].mxu0 %v319
        %v470 = vpop.f32.mrb[0].mxu0
        %v471 = vadd.f32 0.0, %v470
        %v472 = vpop.f32.mrb[0].mxu0
        %473 = vmatprep.mubr.f32.mxu0 0.0
        %474 = vmatmul.mubr.f32.gmra.mrb[0].mxu0 %v322
        %v475 = vpop.f32.mrb[0].mxu0
        %v476 = vadd.f32 0.0, %v475
        %v477 = vpop.f32.mrb[0].mxu0
        %478 = vmatprep.mubr.f32.mxu0 0.0
        %479 = vmatmul.mubr.f32.gmra.mrb[0].mxu0 %v325
        %v480 = vpop.f32.mrb[0].mxu0
        %v481 = vadd.f32 0.0, %v480
        %v482 = vpop.f32.mrb[0].mxu0
        %483 = vmatprep.mubr.f32.mxu0 0.0
        %484 = vmatmul.mubr.f32.gmra.mrb[0].mxu0 %v328
        %v485 = vpop.f32.mrb[0].mxu0
        %v486 = vadd.f32 0.0, %v485
        %v487 = vpop.f32.mrb[0].mxu0
        %488 = vmatprep.mubr.f32.mxu0 0.0
        %489 = vmatmul.mubr.f32.gmra.mrb[0].mxu0 %v331
        %v490 = vpop.f32.mrb[0].mxu0
        %v491 = vadd.f32 0.0, %v490
        %v492 = vpop.f32.mrb[0].mxu0
        %493 = vmatprep.mubr.f32.mxu0 0.0
        %494 = vmatmul.mubr.f32.gmra.mrb[0].mxu0 %v334
        %v495 = vpop.f32.mrb[0].mxu0
        %v496 = vadd.f32 0.0, %v495
        %v497 = vpop.f32.mrb[0].mxu0
        %498 = vmatprep.mubr.f32.mxu0 0.0
        %499 = vmatmul.mubr.f32.gmra.mrb[0].mxu0 %v337
        %v500 = vpop.f32.mrb[0].mxu0
        %v501 = vadd.f32 0.0, %v500
        %v502 = vpop.f32.mrb[0].mxu0
        %503 = vdwg.mxu0
        %504 = vst.msk [vmem:[#allocation2] sm:$0xff] %vm278, %v406
        %505 = vst.msk [vmem:[#allocation2 + $0x10] sm:$0xff] %vm278, %v411
        %508 = vrot.lane.b32.xlu0 %v416, 16
        %v509 = vpop.permute.xlu0 %508
        %510 = vrot.lane.b32.xlu0 %v421, 16
        %v511 = vpop.permute.xlu0 %510
        %vm514 = vcmask 261248
        %515 = vst.msk [vmem:[#allocation2] sm:$0xff] %vm514, %v509
        %516 = vst.msk [vmem:[#allocation2 + $0x10] sm:$0xff] %vm514, %v511
        %519 = vrot.lane.b32.xlu0 %v426, 32
        %v520 = vpop.permute.xlu0 %519
        %521 = vrot.lane.b32.xlu0 %v431, 32
        %v522 = vpop.permute.xlu0 %521
        %vm525 = vcmask 392448
        %526 = vst.msk [vmem:[#allocation2] sm:$0xff] %vm525, %v520
        %527 = vst.msk [vmem:[#allocation2 + $0x10] sm:$0xff] %vm525, %v522
        %530 = vrot.lane.b32.xlu0 %v436, 48
        %v531 = vpop.permute.xlu0 %530
        %532 = vrot.lane.b32.xlu0 %v441, 48
        %v533 = vpop.permute.xlu0 %532
        %vm536 = vcmask 523648
        %537 = vst.msk [vmem:[#allocation2] sm:$0xff] %vm536, %v531
        %538 = vst.msk [vmem:[#allocation2 + $0x10] sm:$0xff] %vm536, %v533
        %541 = vrot.lane.b32.xlu0 %v446, 64
        %v542 = vpop.permute.xlu0 %541
        %543 = vrot.lane.b32.xlu0 %v451, 64
        %v544 = vpop.permute.xlu0 %543
        %vm547 = vcmask 654848
        %548 = vst.msk [vmem:[#allocation2] sm:$0xff] %vm547, %v542
        %549 = vst.msk [vmem:[#allocation2 + $0x10] sm:$0xff] %vm547, %v544
        %552 = vrot.lane.b32.xlu0 %v456, 80
        %v553 = vpop.permute.xlu0 %552
        %554 = vrot.lane.b32.xlu0 %v461, 80
        %v555 = vpop.permute.xlu0 %554
        %vm558 = vcmask 786048
        %559 = vst.msk [vmem:[#allocation2] sm:$0xff] %vm558, %v553
        %560 = vst.msk [vmem:[#allocation2 + $0x10] sm:$0xff] %vm558, %v555
        %563 = vrot.lane.b32.xlu0 %v466, 96
        %v564 = vpop.permute.xlu0 %563
        %565 = vrot.lane.b32.xlu0 %v471, 96
        %v566 = vpop.permute.xlu0 %565
        %vm569 = vcmask 917248
        %570 = vst.msk [vmem:[#allocation2] sm:$0xff] %vm569, %v564
        %571 = vst.msk [vmem:[#allocation2 + $0x10] sm:$0xff] %vm569, %v566
        %574 = vrot.lane.b32.xlu0 %v476, 112
        %v575 = vpop.permute.xlu0 %574
        %576 = vrot.lane.b32.xlu0 %v481, 112
        %v577 = vpop.permute.xlu0 %576
        %vm580 = vcmask 1048448
        %581 = vst.msk [vmem:[#allocation2] sm:$0xff] %vm580, %v575
        %582 = vst.msk [vmem:[#allocation2 + $0x10] sm:$0xff] %vm580, %v577
        %583 = vst.msk [vmem:[#allocation2 + $0x8] sm:$0xff] %vm278, %v486
        %584 = vst.msk [vmem:[#allocation2 + $0x18] sm:$0xff] %vm278, %v491
        %587 = vrot.lane.b32.xlu0 %v496, 16
        %v588 = vpop.permute.xlu0 %587
        %589 = vrot.lane.b32.xlu0 %v501, 16
        %v590 = vpop.permute.xlu0 %589
        %593 = vst.msk [vmem:[#allocation2 + $0x8] sm:$0xff] %vm514, %v588
        %594 = vst.msk [vmem:[#allocation2 + $0x18] sm:$0xff] %vm514, %v590
        %v595 = vld [vmem:[#allocation2] sm:$0xff]
        %v596 = vld [vmem:[#allocation2 + $0x8] sm:$0xff]
        %v597 = vld [vmem:[#allocation2 + $0x10] sm:$0xff]
        %v598 = vld [vmem:[#allocation2 + $0x18] sm:$0xff]
        %v600 = vsel %vm278, %v254, 0
        %v603 = vsel %vm278, %v255, 0
        %605 = vmatprep.subr.mxu0 %v596
        %606 = vmatpush1.msra.mxu0 %v595
        %607 = vmatprep.subr.mxu0 %v598
        %608 = vmatpush1.msra.mxu0 %v597
        %609 = vmatprep.subr.mxu0 0.0
        %610 = vmatpush1.msra.mxu0 0.0
        %611 = vmatprep.subr.mxu0 0.0
        %612 = vmatpush1.msra.mxu0 0.0
        %613 = vmatprep.subr.mxu0 0.0
        %614 = vmatpush1.msra.mxu0 0.0
        %615 = vmatprep.subr.mxu0 0.0
        %616 = vmatpush1.msra.mxu0 0.0
        %617 = vmatprep.subr.mxu0 0.0
        %618 = vmatpush1.msra.mxu0 0.0
        %619 = vmatprep.subr.mxu0 0.0
        %620 = vmatpush1.msra.mxu0 0.0
        %621 = vmatprep.subr.mxu0 0.0
        %622 = vmatpush1.msra.mxu0 0.0
        %623 = vmatprep.subr.mxu0 0.0
        %624 = vmatpush1.msra.mxu0 0.0
        %625 = vmatprep.subr.mxu0 0.0
        %626 = vmatpush1.msra.mxu0 0.0
        %627 = vmatprep.subr.mxu0 0.0
        %628 = vmatpush1.msra.mxu0 0.0
        %629 = vmatprep.subr.mxu0 0.0
        %630 = vmatpush1.msra.mxu0 0.0
        %631 = vmatprep.subr.mxu0 0.0
        %632 = vmatpush1.msra.mxu0 0.0
        %633 = vmatprep.subr.mxu0 0.0
        %634 = vmatpush1.msra.mxu0 0.0
        %635 = vmatprep.subr.mxu0 0.0
        %636 = vmatpush1.msra.mxu0 0.0
        %637 = vmatprep.subr.mxu0 0.0
        %638 = vmatpush1.msra.mxu0 0.0
        %639 = vmatprep.subr.mxu0 0.0
        %640 = vmatpush1.msra.mxu0 0.0
        %641 = vmatprep.subr.mxu0 0.0
        %642 = vmatpush1.msra.mxu0 0.0
        %643 = vmatprep.subr.mxu0 0.0
        %644 = vmatpush1.msra.mxu0 0.0
        %645 = vmatprep.subr.mxu0 0.0
        %646 = vmatpush1.msra.mxu0 0.0
        %647 = vmatprep.subr.mxu0 0.0
        %648 = vmatpush1.msra.mxu0 0.0
        %649 = vmatprep.subr.mxu0 0.0
        %650 = vmatpush1.msra.mxu0 0.0
        %651 = vmatprep.subr.mxu0 0.0
        %652 = vmatpush1.msra.mxu0 0.0
        %653 = vmatprep.subr.mxu0 0.0
        %654 = vmatpush1.msra.mxu0 0.0
        %655 = vmatprep.subr.mxu0 0.0
        %656 = vmatpush1.msra.mxu0 0.0
        %657 = vmatprep.subr.mxu0 0.0
        %658 = vmatpush1.msra.mxu0 0.0
        %659 = vmatprep.subr.mxu0 0.0
        %660 = vmatpush1.msra.mxu0 0.0
        %661 = vmatprep.subr.mxu0 0.0
        %662 = vmatpush1.msra.mxu0 0.0
        %663 = vmatprep.subr.mxu0 0.0
        %664 = vmatpush1.msra.mxu0 0.0
        %665 = vmatprep.subr.mxu0 0.0
        %666 = vmatpush1.msra.mxu0 0.0
        %667 = vmatprep.subr.mxu0 0.0
        %668 = vmatpush1.msra.mxu0 0.0
        %669 = vmatprep.mubr.f32.mxu0 0.0
        %670 = vmatmul.mubr.f32.gmra.mrb[0].mxu0 %v600
        %v671 = vpop.f32.mrb[0].mxu0
        %v672 = vadd.f32 0.0, %v671
        %v673 = vpop.f32.mrb[0].mxu0
        %v674 = vadd.f32 0.0, %v673
        %675 = vmatprep.mubr.f32.mxu0 0.0
        %676 = vmatmul.mubr.f32.gmra.mrb[0].mxu0 %v603
        %v677 = vpop.f32.mrb[0].mxu0
        %v678 = vadd.f32 0.0, %v677
        %v679 = vpop.f32.mrb[0].mxu0
        %v680 = vadd.f32 0.0, %v679
        %681 = vdwg.mxu0
        %v682 = vmul.f32 %v672, %v672
        %v683 = vmul.f32 %v678, %v678
        %686 = vrot.lane.b32.xlu0 %v672, 96
        %v687 = vpop.permute.xlu0 %686
        %688 = vrot.lane.b32.xlu0 %v678, 96
        %v689 = vpop.permute.xlu0 %688
        %v692 = vmul.f32 %v672, %v687
        %v693 = vmul.f32 %v678, %v689
        %696 = vrot.lane.b32.xlu0 %v682, 64
        %v697 = vpop.permute.xlu0 %696
        %698 = vrot.lane.b32.xlu0 %v683, 64
        %v699 = vpop.permute.xlu0 %698
        %v702 = vsub.f32 %v672, %v697
        %v703 = vsub.f32 %v678, %v699
        %v704 = vsub.f32 %v674, %v692
        %v705 = vsub.f32 %v680, %v693
        %v706 = vmul.f32 %v692, 2.0
        %v707 = vmul.f32 %v693, 2.0
        %v708 = vadd.f32 %v706, 0.0001
        %v709 = vadd.f32 %v707, 0.0001
        %v710 = vmul.f32 %v704, 2.0
        %v711 = vmul.f32 %v705, 2.0
        %v712 = vadd.f32 %v710, 0.0009
        %v713 = vadd.f32 %v711, 0.0009
        %v714 = vmul.f32 %v708, %v712
        %v715 = vmul.f32 %v709, %v713
        %716 = vrot.lane.b32.xlu0 %v682, 96
        %v717 = vpop.permute.xlu0 %716
        %718 = vrot.lane.b32.xlu0 %v683, 96
        %v719 = vpop.permute.xlu0 %718
        %v722 = vadd.f32 %v682, %v717
        %v723 = vadd.f32 %v683, %v719
        %v724 = vadd.f32 %v722, 0.0001
        %v725 = vadd.f32 %v723, 0.0001
        %728 = vrot.lane.b32.xlu0 %v702, 96
        %v729 = vpop.permute.xlu0 %728
        %730 = vrot.lane.b32.xlu0 %v703, 96
        %v731 = vpop.permute.xlu0 %730
        %v734 = vadd.f32 %v702, %v729
        %v735 = vadd.f32 %v703, %v731
        %v736 = vadd.f32 %v734, 0.0009
        %v737 = vadd.f32 %v735, 0.0009
        %740 = vrot.lane.b32.xlu0 %v736, 64
        %v741 = vpop.permute.xlu0 %740
        %742 = vrot.lane.b32.xlu0 %v737, 64
        %v743 = vpop.permute.xlu0 %742
        %v746 = vmul.f32 %v724, %v741
        %v747 = vmul.f32 %v725, %v743
        %v748 = vrcp.pop %v746
        %v749 = vrcp.pop %v747
        %v750 = vmul.f32 %v746, %v748
        %v751 = vmul.f32 %v747, %v749
        %v752 = vsub.f32 2.0, %v750
        %v753 = vsub.f32 2.0, %v751
        %v754 = vmul.f32 %v748, %v752
        %v755 = vmul.f32 %v749, %v753
        %v756 = vmul.f32 %v714, %v754
        %v757 = vmul.f32 %v715, %v755
        %vm758 = vcmask 261120
        %v759 = vsel %vm758, %v756, 0.0
        %v760 = vsel %vm758, %v757, 0.0
        %v761 = vadd.f32 %v759, %v760
        %v762 = vrot.slane %v761, 4
        %v763 = vadd.f32 %v761, %v762
        %v764 = vrot.slane %v763, 2
        %v765 = vadd.f32 %v763, %v764
        %v766 = vrot.slane %v765, 1
        %v767 = vadd.f32 %v765, %v766
        %vm768 = vcmask 253952
        %769 = vst.msk [vmem:[%s253] sm:$0x1] %vm768, %v767
        %p770 = scmp.lt.s32.totalorder %s21, 3
        %s771 = scalar_select %p770, %s21, 3
        %s772 = scalar_lea.vmem %s4, %s771
        // Predicated region
        $region45: #{ssim_loss.1} parent=35 // pred_check
          %p773 = pneg %p133
        $region46: #{ssim_loss.1} parent=35 // pred_check_branch
          %775 = sbr.rel (%p773) target = $region48
        $region47: #{ssim_loss.1} parent=35 // pred_region
          _
        $region48: #{ssim_loss.1} parent=35 // pred_fallthru
          _
      $region36: #{ssim_loss.1} parent=5 // pred_fallthru
        _
      %p776 = scmp.le.s32.totalorder 2, %s16
      // Predicated region
      $region49: #{ssim_loss.1} parent=5 // pred_check
        %p777 = pneg %p776
      $region50: #{ssim_loss.1} parent=5 // pred_check_branch
        %779 = sbr.rel (%p777) target = $region52
      $region51: #{ssim_loss.1} parent=5 // pred_region
        %s780 = ssub.s32 %s16, 2
        // Predicated region
        $region53: #{ssim_loss.1} parent=51 // pred_check
          %p781 = pneg %p139
        $region54: #{ssim_loss.1} parent=51 // pred_check_branch
          %783 = sbr.rel (%p781) target = $region56
        $region55: #{ssim_loss.1} parent=51 // pred_region
          %p784 = scmp.lt.s32.totalorder %s22, 3
          %s785 = scalar_select %p784, %s22, 3
          %s786 = scalar_lea.vmem %s4, %s785
        $region56: #{ssim_loss.1} parent=51 // pred_fallthru
          _
      $region52: #{ssim_loss.1} parent=5 // pred_fallthru
        _
    $region6: #{ssim_loss.1} parent=1 // loop_footer
      %s20 = sadd.s32 1, %s16
    $region7: #{ssim_loss.1} parent=1 // loop_footer_branch
      %15 = sbr.rel target = $region3
    $region8: #{ssim_loss.1} parent=1 // loop_exit
      _
    %787 = vsyncpa [#allocation4], 1
    %s788 = scalar_lea.sflag [#allocation4], 1
    %789 = vsyncpa %s788, 1
    %790 = vsyncpa [#allocation6], 1
    %s791 = scalar_lea.sflag [#allocation6], 1
    %792 = vsyncpa %s791, 1

</llo_original>
